<compile_context>
chip_gen: v7x
topology: tpu7x:2x2x1
jax: 0.10.0
libtpu: 0.0.40
codegen_flags: <defaults>
</compile_context>

<pallas_src>
import jax
import jax.numpy as jnp
from jax.experimental import pallas as pl
from jax.experimental.pallas import tpu as pltpu


# ---------------------------------------------------------------------------
# Deterministic parameter init, mirroring gen_rand_bits(shape, prob1):
#   (torch.rand(shape) + prob1).byte() * 255   (uint8, wrap-around mul)
# ---------------------------------------------------------------------------
def gen_rand_bits(key, shape, prob1=0.5):
    r = jax.random.uniform(key, shape, dtype=jnp.float32)
    bits = jnp.floor(r + prob1).astype(jnp.uint8)         # 0 or 1
    return (bits * jnp.uint8(255)).astype(jnp.uint8)       # 0 or 255


# ---------------------------------------------------------------------------
# Pallas kernel: out = x ^ w_inv   (uint8; w_inv = w ^ 255 pre-folded)
# Single VPU bitwise op per vreg; weight row broadcast over sublanes.
# ---------------------------------------------------------------------------
def xnor_kernel(x_ref, w_ref, o_ref):
    # x_ref: (tb, tw) uint8, w_ref: (1, tw) uint8, o_ref: (tb, tw) uint8
    o_ref[...] = x_ref[...] ^ w_ref[...]


def _choose_tiles(B, W, target_bytes=1 << 22, min_split_bytes=512 << 10):
    """Pick (row_tile, lane_tile) for a (B, W) uint8 array.

    Guarantees:
      * tile bytes <= target_bytes  (so double-buffered in+out <= 4*target)
      * row tile is a multiple of 32 (int8 sublane tile) or the full B
      * lane tile is a multiple of 128 or the full W
      * inputs larger than min_split_bytes always yield >= 2 grid steps
    """
    # Lane tile: full width unless even a 32-row slab would blow the budget
    # (huge W).  W = 2**log_width, so halving keeps multiples of 128.
    tw = W
    while tw % 256 == 0 and 32 * tw > target_bytes:
        tw //= 2
    n_w = -(-W // tw)

    total = B * W
    if total <= min_split_bytes and n_w == 1:
        return B, tw                       # one small full-array block
    if B <= 32:
        return B, tw                       # rows can't split; lanes may

    tb = max(32, (target_bytes // tw) // 32 * 32)
    if n_w == 1:
        # Force >= 2 row blocks so both v7x TensorCores get work.
        half = -(-B // 2)
        half = -(-half // 32) * 32
        tb = min(tb, max(32, half))
    tb = min(tb, (B // 32) * 32)           # keep tb <= B, multiple of 32
    return tb, tw


def _xnor_2d(x, w_inv, target_bytes=1 << 22):
    """x: (B, W) uint8, w_inv: (W,) uint8  ->  x ^ w_inv (broadcast over rows)."""
    B, W = x.shape
    tb, tw = _choose_tiles(B, W, target_bytes=target_bytes)
    grid = (pl.cdiv(B, tb), pl.cdiv(W, tw))

    return pl.pallas_call(
        xnor_kernel,
        out_shape=jax.ShapeDtypeStruct((B, W), jnp.uint8),
        grid_spec=pltpu.PrefetchScalarGridSpec(
            num_scalar_prefetch=0,
            grid=grid,
            in_specs=[
                pl.BlockSpec((tb, tw), lambda i, j: (i, j)),   # x tile
                pl.BlockSpec((1, tw), lambda i, j: (0, j)),    # resident weight row
            ],
            out_specs=pl.BlockSpec((tb, tw), lambda i, j: (i, j)),
        ),
        compiler_params=pltpu.CompilerParams(
            dimension_semantics=("parallel", "parallel"),
            vmem_limit_bytes=32 << 20,
        ),
        cost_estimate=pl.CostEstimate(
            flops=0, transcendentals=0, bytes_accessed=2 * B * W + W),
    )(x, w_inv.reshape(1, W))


def reductionist_binary_forward(x, w):
    """x: (B, W) uint8, w: (W,) uint8 -> (B, W) uint8 = x ^ w ^ 255."""
    assert x.dtype == jnp.uint8 and w.dtype == jnp.uint8
    B, W = x.shape
    assert w.shape == (W,)

    # Fold the ^255 into the weight once (W-element op, negligible).
    w_inv = w ^ jnp.uint8(255)

    # Narrow widths (log_width < 7): repack to a lane-dense (B*W/128, 128)
    # layout (row-major reshape; weight period W divides 128) so the output
    # last dim is >= 128 lanes and stores are unmasked.
    if W < 128 and 128 % W == 0 and B * W >= 128 and (B * W) % 128 == 0:
        reps = 128 // W
        out = _xnor_2d(x.reshape(B * W // 128, 128), jnp.tile(w_inv, reps))
        return out.reshape(B, W)

    return _xnor_2d(x, w_inv)


class ReductionistBinary:
    """JAX mirror of Reductionist_Binary(log_width, depth)."""

    def __init__(self, log_width, depth, key):
        keys = jax.random.split(key, depth)
        # nn.ParameterList of gen_rand_bits(2**(log_width - i), prob1=1)
        self.ws = [
            gen_rand_bits(keys[i], (2 ** (log_width - i),), prob1=1.0)
            for i in range(depth)
        ]
        # TODO(synk): self.b is ill-formed in the original module (function
        # passed as a shape) and unused in forward; omitted.

    def __call__(self, x):
        return reductionist_binary_forward(x, self.ws[0])


if __name__ == "__main__":
    key = jax.random.PRNGKey(0)
    k_w, k_x1, k_x2, k_x3, k_w2, k_x4 = jax.random.split(key, 6)

    log_width, depth = 7, 3            # width = 128
    width = 2 ** log_width
    model = ReductionistBinary(log_width, depth, k_w)

    def ref_xnor(x, w):
        return (x ^ w[None, :] ^ jnp.uint8(255)).astype(jnp.uint8)

    # Small shape consistent with the module: batch=32, width=128.
    x1 = gen_rand_bits(k_x1, (32, width), prob1=0.5)
    out1 = jax.block_until_ready(model(x1))
    assert out1.dtype == jnp.uint8 and out1.shape == x1.shape
    assert bool(jnp.all(out1 == ref_xnor(x1, model.ws[0])))

    # Ragged batch: handled natively, no padding copy.
    x2 = gen_rand_bits(k_x2, (10, width), prob1=0.5)
    out2 = jax.block_until_ready(model(x2))
    assert out2.shape == (10, width)
    assert bool(jnp.all(out2 == ref_xnor(x2, model.ws[0])))

    # Larger batch: exercises >=2 grid steps and a partial edge block.
    x3 = gen_rand_bits(k_x3, (8200, width), prob1=0.5)
    out3 = jax.block_until_ready(model(x3))
    assert bool(jnp.all(out3 == ref_xnor(x3, model.ws[0])))

    # Narrow width (log_width=5 -> W=32): lane-dense repacking path.
    model2 = ReductionistBinary(5, 2, k_w2)
    x4 = gen_rand_bits(k_x4, (8, 32), prob1=0.5)
    out4 = jax.block_until_ready(model2(x4))
    assert out4.shape == (8, 32)
    assert bool(jnp.all(out4 == ref_xnor(x4, model2.ws[0])))

    print("KERNEL_OK")
</pallas_src>

<mosaic_0001>
module attributes {stable_mosaic.version = 11 : i64} {
  func.func @xnor_kernel(%arg0: i32, %arg1: i32, %arg2: memref<32x128xi8, #tpu.memory_space<vmem>>, %arg3: memref<1x128xi8, #tpu.memory_space<vmem>>, %arg4: memref<32x128xi8, #tpu.memory_space<vmem>>) attributes {dimension_semantics = [#tpu.dimension_semantics<parallel>, #tpu.dimension_semantics<parallel>], iteration_bounds = array<i64: 1, 1>, scalar_prefetch = 0 : i64, scratch_operands = 0 : i64, tpu.core_type = #tpu.core_type<tc>, window_params = [{transform_indices = @transform_0, window_bounds = array<i64: 32, 128>}, {transform_indices = @transform_1, window_bounds = array<i64: 1, 128>}, {transform_indices = @transform_2, window_bounds = array<i64: 32, 128>}]} {
    %c0 = arith.constant 0 : index
    %c0_0 = arith.constant 0 : index
    %0 = vector.load %arg2[%c0, %c0_0] : memref<32x128xi8, #tpu.memory_space<vmem>>, vector<32x128xi8>
    %c0_1 = arith.constant 0 : index
    %c0_2 = arith.constant 0 : index
    %1 = vector.load %arg3[%c0_1, %c0_2] : memref<1x128xi8, #tpu.memory_space<vmem>>, vector<1x128xi8>
    %2 = vector.broadcast %1 : vector<1x128xi8> to vector<32x128xi8>
    %3 = arith.xori %0, %2 : vector<32x128xi8>
    %c0_3 = arith.constant 0 : index
    %c0_4 = arith.constant 0 : index
    %4 = vector.load %arg4[%c0_3, %c0_4] : memref<32x128xi8, #tpu.memory_space<vmem>>, vector<32x128xi8>
    tpu.vector_store %arg4[%c0_3, %c0_4], %3 {strides = array<i32>} : memref<32x128xi8, #tpu.memory_space<vmem>>, vector<32x128xi8>,
    return
  }
  func.func @transform_0(%arg0: i32, %arg1: i32) -> (i32, i32) {
    %c0_i32 = arith.constant 0 : i32
    return %arg0, %arg1 : i32, i32
  }
  func.func @transform_1(%arg0: i32, %arg1: i32) -> (i32, i32) {
    %c0_i32 = arith.constant 0 : i32
    %c0_i32_0 = arith.constant 0 : i32
    return %c0_i32, %arg1 : i32, i32
  }
  func.func @transform_2(%arg0: i32, %arg1: i32) -> (i32, i32) {
    %c0_i32 = arith.constant 0 : i32
    return %arg0, %arg1 : i32, i32
  }
}

</mosaic_0001>

<llo_original>
// kernel: tpu_custom_call.1
$region0: #{tpu_custom_call.1}
  #allocation0 [shape = 'u32[]', space=smem, size = 0x4, offset = 0x4, fixed_abs, tag = 'smem constant byte address 0x4 - core index']
  #allocation1 [shape = 'u32[144,128]{1,0:T(1,128)}', space=vmem, size = 0x12000, scoped, tag = 'internal scratch']
  %s0 = inlined_call_operand.hbm [shape: u8[32,128], index: 0, kind: input, shape index: {}]
  %s1 = inlined_call_operand.vmem [shape: u8[1,128], index: 1, kind: input, shape index: {}]
  %s2 = inlined_call_operand.hbm [shape: u8[32,128], index: 2, kind: output, shape index: {}]
  %s3 = sld [smem:[#allocation0]]
  $region22: #{tpu_custom_call.1} parent=0
    _
  %s5 = ssub.s32 1, %s3
  %s6 = scalar_select 0, %s5, %s3
  $region1: #{tpu_custom_call.1} parent=0
    #allocation2 [shape = 'u8[4096]{0}', space=vmem, size = 0x1000, scoped, tag = 'input window, operand 0, single buffered']
    #allocation3 [shape = 's32[1]{0}', space=sflag, size = 0x4, scoped, tag = 'scoped memory for tpu_custom_call.1']
    #allocation4 [shape = 's32[1]{0}', space=sflag, size = 0x4, scoped, tag = 'scoped memory for tpu_custom_call.1']
    #allocation5 [shape = 'u8[4096]{0}', space=vmem, size = 0x1000, scoped, tag = 'output window, operand 0, single buffered']
    %7 = vsyncpa [#allocation3], 0
    %8 = vsyncpa [#allocation4], 0
    // Predicated region
    $region2: #{tpu_custom_call.1} parent=1 // pred_check
      _
    $region3: #{tpu_custom_call.1} parent=1 // pred_check_branch
      %10 = sbr.rel (0) target = $region5
    $region4: #{tpu_custom_call.1} parent=1 // pred_region
      %s12 = ssub.s32 128, 128
      %13 = vsyncadd [#allocation3], %s12
      %s15 = sshll.u32 [#allocation2], 4
      %s16 = int_to_ptr.vmem [resolvable:$true] %s15
      %18 = dma.hbm_to_vmem [thread:$0]  %s0, 128, %s16, [#allocation3]
    $region5: #{tpu_custom_call.1} parent=1 // pred_fallthru
      _
    // Predicated region
    $region6: #{tpu_custom_call.1} parent=1 // pred_check
      _
    $region7: #{tpu_custom_call.1} parent=1 // pred_check_branch
      %20 = sbr.rel (0) target = $region9
    $region8: #{tpu_custom_call.1} parent=1 // pred_region
      _
    $region9: #{tpu_custom_call.1} parent=1 // pred_fallthru
      _
    // Predicated region
    $region10: #{tpu_custom_call.1} parent=1 // pred_check
      _
    $region11: #{tpu_custom_call.1} parent=1 // pred_check_branch
      %22 = sbr.rel (0) target = $region13
    $region12: #{tpu_custom_call.1} parent=1 // pred_region
      %23 = dma.done [#allocation3], 128
    $region13: #{tpu_custom_call.1} parent=1 // pred_fallthru
      _
    %v24 = vld [vmem:[#allocation2] sm:$0xff]
    %v25 = vld [vmem:[%s1] sm:$0x1]
    %v27 = vpack.i.b16 %v25, %v25
    %v28 = vpack.i.b8 %v27, %v27
    %v29 = vlaneseq
    %v30 = vshrl.u32 %v29, 7
    %v31 = vsub.s32 0, %v30
    %v32 = vrot.slane %v28, %v31
    %v33 = vxor.u32 %v24, %v32
    %34 = vst [vmem:[#allocation5] sm:$0xff] %v33
    // Predicated region
    $region14: #{tpu_custom_call.1} parent=1 // pred_check
      _
    $region15: #{tpu_custom_call.1} parent=1 // pred_check_branch
      %36 = sbr.rel (0) target = $region17
    $region16: #{tpu_custom_call.1} parent=1 // pred_region
      %s38 = ssub.s32 128, 128
      %39 = vsyncadd [#allocation4], %s38
      %s41 = sshll.u32 [#allocation5], 4
      %s42 = int_to_ptr.vmem [resolvable:$true] %s41
      %44 = dma.vmem_to_hbm [thread:$0]  %s42, 128, %s2, [#allocation4]
    $region17: #{tpu_custom_call.1} parent=1 // pred_fallthru
      _
    // Predicated region
    $region18: #{tpu_custom_call.1} parent=1 // pred_check
      _
    $region19: #{tpu_custom_call.1} parent=1 // pred_check_branch
      %46 = sbr.rel (0) target = $region21
    $region20: #{tpu_custom_call.1} parent=1 // pred_region
      %47 = dma.done [#allocation4], 128
    $region21: #{tpu_custom_call.1} parent=1 // pred_fallthru
      _
    %48 = vsyncpa [#allocation3], 1
    %49 = vsyncpa [#allocation4], 1

</llo_original>
